<compile_context>
chip_gen: v7x
topology: tpu7x:2x2x1
jax: 0.10.0
libtpu: 0.0.40
codegen_flags: <defaults>
</compile_context>

<pallas_src>
import jax
import jax.numpy as jnp
from jax import lax
from jax.experimental import pallas as pl
from jax.experimental.pallas import tpu as pltpu


def critic_low_kernel(s_ref, w1_ref, b1_ref, w2_ref, b2_ref, out_ref):
    # fc layer on the MXU with batch mapped to lanes:
    #   h[f, b] = sum_d W1[f, d] * s[b, d]     -> (hidden, TILE_B), f32 accum.
    h = lax.dot_general(
        w1_ref[...], s_ref[...],
        dimension_numbers=(((1,), (1,)), ((), ())),
        preferred_element_type=jnp.float32,
    )
    # Bias + ReLU on the VPU; b1 is a (hidden, 1) column broadcast over lanes.
    h = jnp.maximum(h + b1_ref[...], 0.0)
    # v_head (10 -> 1): VPU multiply by the (hidden, 1) weight column followed
    # by a cheap sublane reduce -- no second MXU matmul, result stays lane-dense.
    v = jnp.sum(h * w2_ref[...], axis=0, keepdims=True) + b2_ref[0, 0]  # (1, TILE_B)
    out_ref[...] = v.astype(out_ref.dtype)


def _round_up(x, m):
    return ((x + m - 1) // m) * m


def critic_low_forward(state, w1, b1, w2, b2, *, tile_b=2048, use_bf16=True):
    """state: (B, state_dim); w1: (hidden, state_dim); b1: (hidden,);
    w2: (1, hidden); b2: (1,).  Returns (B, 1) float32."""
    B, state_dim = state.shape
    hidden = w1.shape[0]

    compute_dtype = jnp.bfloat16 if use_bf16 else jnp.float32
    s = state.astype(compute_dtype)
    w1c = w1.astype(compute_dtype)                              # (hidden, state_dim)
    b1c = jnp.asarray(b1, jnp.float32).reshape(hidden, 1)       # column -> lane bcast
    w2c = jnp.asarray(w2, jnp.float32).reshape(hidden, 1)       # column -> lane bcast
    b2c = jnp.asarray(b2, jnp.float32).reshape(1, 1)            # scalar, lives in SMEM

    # Pick the batch tile: sublane-aligned for a single tile, lane-aligned (128)
    # when the grid has several tiles so every output row is lane-dense.
    tile_b = int(tile_b)
    if B <= tile_b:
        tile_b = max(8, _round_up(B, 8))
    else:
        tile_b = max(128, _round_up(tile_b, 128))
    num_tiles = pl.cdiv(B, tile_b)
    padded_b = num_tiles * tile_b
    if padded_b != B:
        s = jnp.pad(s, ((0, padded_b - B), (0, 0)))

    out_rows = pl.pallas_call(
        critic_low_kernel,
        out_shape=jax.ShapeDtypeStruct((num_tiles, 1, tile_b), jnp.float32),
        grid=(num_tiles,),
        in_specs=[
            # state: the only HBM stream that scales with batch; double-buffered.
            pl.BlockSpec((tile_b, state_dim), lambda i: (i, 0)),
            # weights / biases: constant index_map -> stay VMEM-resident.
            pl.BlockSpec((hidden, state_dim), lambda i: (0, 0)),
            pl.BlockSpec((hidden, 1), lambda i: (0, 0)),
            pl.BlockSpec((hidden, 1), lambda i: (0, 0)),
            # b2: one scalar in SMEM (avoid a padded (8,128) VMEM tile).
            pl.BlockSpec(memory_space=pltpu.MemorySpace.SMEM),
        ],
        # Lane-dense output row per grid step; leading tile axis is squeezed.
        out_specs=pl.BlockSpec((None, 1, tile_b), lambda i: (i, 0, 0)),
        compiler_params=pltpu.CompilerParams(
            dimension_semantics=("parallel",),  # shard batch tiles across TCs on v7x
        ),
    )(s, w1c, b1c, w2c, b2c)

    # (num_tiles, 1, tile_b) is contiguous in batch order -> free reshape + slice.
    return out_rows.reshape(padded_b, 1)[:B]


def init_params(key, state_dim, hidden=10, out_dim=1, dtype=jnp.float32):
    # PyTorch nn.Linear default init: U(-1/sqrt(fan_in), 1/sqrt(fan_in)),
    # weights stored in the PyTorch (out_features, in_features) layout.
    k1, k2, k3, k4 = jax.random.split(key, 4)
    bound1 = 1.0 / jnp.sqrt(jnp.asarray(state_dim, dtype))
    bound2 = 1.0 / jnp.sqrt(jnp.asarray(hidden, dtype))
    w1 = jax.random.uniform(k1, (hidden, state_dim), dtype, -bound1, bound1)
    b1 = jax.random.uniform(k2, (hidden,), dtype, -bound1, bound1)
    w2 = jax.random.uniform(k3, (out_dim, hidden), dtype, -bound2, bound2)
    b2 = jax.random.uniform(k4, (out_dim,), dtype, -bound2, bound2)
    return w1, b1, w2, b2


if __name__ == "__main__":
    key = jax.random.PRNGKey(0)
    k_params, k_small, k_big = jax.random.split(key, 3)

    state_dim, hidden = 32, 10
    w1, b1, w2, b2 = init_params(k_params, state_dim, hidden)

    # --- Small batch, pure f32 path (exact vs reference) ---------------------
    small = jax.random.normal(k_small, (8, state_dim), jnp.float32)
    v_small = jax.block_until_ready(
        critic_low_forward(small, w1, b1, w2, b2, use_bf16=False))
    ref_small = jnp.maximum(small @ w1.T + b1, 0.0) @ w2.T + b2
    assert v_small.shape == (8, 1)
    assert jnp.allclose(v_small, ref_small, atol=1e-5, rtol=1e-5)

    # --- Larger batch exercising the pipelined grid, padding and bf16 stream --
    B_big = 2048 + 24  # deliberately not a multiple of the tile
    big = jax.random.normal(k_big, (B_big, state_dim), jnp.float32)
    v_big = jax.block_until_ready(
        critic_low_forward(big, w1, b1, w2, b2, tile_b=512, use_bf16=True))
    ref_big = jnp.maximum(big @ w1.T + b1, 0.0) @ w2.T + b2
    assert v_big.shape == (B_big, 1)
    assert jnp.allclose(v_big, ref_big, atol=5e-2, rtol=5e-2)

    print("KERNEL_OK")
</pallas_src>

<mosaic_0001>
module attributes {stable_mosaic.version = 11 : i64} {
  func.func @critic_low_kernel(%arg0: i32, %arg1: memref<8x32xf32, #tpu.memory_space<vmem>>, %arg2: memref<10x32xf32, #tpu.memory_space<vmem>>, %arg3: memref<10x1xf32, #tpu.memory_space<vmem>>, %arg4: memref<10x1xf32, #tpu.memory_space<vmem>>, %arg5: memref<1x1xf32, #tpu.memory_space<smem>>, %arg6: memref<1x1x8xf32, #tpu.memory_space<vmem>>) attributes {dimension_semantics = [#tpu.dimension_semantics<parallel>], iteration_bounds = array<i64: 1>, scalar_prefetch = 0 : i64, scratch_operands = 0 : i64, tpu.core_type = #tpu.core_type<tc>, window_params = [{transform_indices = @transform_0, window_bounds = array<i64: 8, 32>}, {pipeline_mode = #tpu.pipeline_mode<synchronous>, transform_indices = @transform_1, window_bounds = array<i64: 10, 32>}, {pipeline_mode = #tpu.pipeline_mode<synchronous>, transform_indices = @transform_2, window_bounds = array<i64: 10, 1>}, {pipeline_mode = #tpu.pipeline_mode<synchronous>, transform_indices = @transform_3, window_bounds = array<i64: 10, 1>}, {transform_indices = @transform_4, window_bounds = array<i64: 1, 1>}, {transform_indices = @transform_5, window_bounds = array<i64: 1, 1, 8>}]} {
    %c0 = arith.constant 0 : index
    %c0_0 = arith.constant 0 : index
    %0 = vector.load %arg2[%c0, %c0_0] : memref<10x32xf32, #tpu.memory_space<vmem>>, vector<10x32xf32>
    %c0_1 = arith.constant 0 : index
    %c0_2 = arith.constant 0 : index
    %1 = vector.load %arg1[%c0_1, %c0_2] : memref<8x32xf32, #tpu.memory_space<vmem>>, vector<8x32xf32>
    %cst = arith.constant dense<0.000000e+00> : vector<10x8xf32>
    %2 = tpu.matmul %0, %1, %cst {dimension_numbers = #tpu.dot_dimension_numbers<[1], [1], [0], [0], [0, 0, 1, 0], [], []>} : vector<10x32xf32>, vector<8x32xf32>, vector<10x8xf32> -> vector<10x8xf32>
    %c0_3 = arith.constant 0 : index
    %c0_4 = arith.constant 0 : index
    %3 = vector.load %arg3[%c0_3, %c0_4] : memref<10x1xf32, #tpu.memory_space<vmem>>, vector<10x1xf32>
    %4 = vector.broadcast %3 : vector<10x1xf32> to vector<10x8xf32>
    %5 = arith.addf %2, %4 : vector<10x8xf32>
    %cst_5 = arith.constant 0.000000e+00 : f32
    %6 = vector.broadcast %cst_5 : f32 to vector<10x8xf32>
    %7 = arith.maximumf %5, %6 : vector<10x8xf32>
    %c0_6 = arith.constant 0 : index
    %c0_7 = arith.constant 0 : index
    %8 = vector.load %arg4[%c0_6, %c0_7] : memref<10x1xf32, #tpu.memory_space<vmem>>, vector<10x1xf32>
    %9 = vector.broadcast %8 : vector<10x1xf32> to vector<10x8xf32>
    %10 = arith.mulf %7, %9 : vector<10x8xf32>
    %cst_8 = arith.constant dense<0.000000e+00> : vector<8xf32>
    %11 = vector.multi_reduction <add>, %10, %cst_8 [0] : vector<10x8xf32> to vector<8xf32>
    %12 = vector.shape_cast %11 : vector<8xf32> to vector<1x8xf32>
    %c0_9 = arith.constant 0 : index
    %c0_10 = arith.constant 0 : index
    %13 = memref.load %arg5[%c0_9, %c0_10] : memref<1x1xf32, #tpu.memory_space<smem>>
    %14 = vector.broadcast %13 : f32 to vector<1x8xf32>
    %15 = arith.addf %12, %14 : vector<1x8xf32>
    %c0_11 = arith.constant 0 : index
    %c0_12 = arith.constant 0 : index
    %c0_13 = arith.constant 0 : index
    %16 = vector.load %arg6[%c0_11, %c0_12, %c0_13] : memref<1x1x8xf32, #tpu.memory_space<vmem>>, vector<1x1x8xf32>
    %17 = vector.shape_cast %16 : vector<1x1x8xf32> to vector<1x8xf32>
    %18 = vector.shape_cast %15 : vector<1x8xf32> to vector<1x1x8xf32>
    tpu.vector_store %arg6[%c0_11, %c0_12, %c0_13], %18 {strides = array<i32>} : memref<1x1x8xf32, #tpu.memory_space<vmem>>, vector<1x1x8xf32>,
    return
  }
  func.func @transform_0(%arg0: i32) -> (i32, i32) {
    %c0_i32 = arith.constant 0 : i32
    %c0_i32_0 = arith.constant 0 : i32
    return %arg0, %c0_i32 : i32, i32
  }
  func.func @transform_1(%arg0: i32) -> (i32, i32) {
    %c0_i32 = arith.constant 0 : i32
    %c0_i32_0 = arith.constant 0 : i32
    %c0_i32_1 = arith.constant 0 : i32
    return %c0_i32, %c0_i32_0 : i32, i32
  }
  func.func @transform_2(%arg0: i32) -> (i32, i32) {
    %c0_i32 = arith.constant 0 : i32
    %c0_i32_0 = arith.constant 0 : i32
    %c0_i32_1 = arith.constant 0 : i32
    return %c0_i32, %c0_i32_0 : i32, i32
  }
  func.func @transform_3(%arg0: i32) -> (i32, i32) {
    %c0_i32 = arith.constant 0 : i32
    %c0_i32_0 = arith.constant 0 : i32
    %c0_i32_1 = arith.constant 0 : i32
    return %c0_i32, %c0_i32_0 : i32, i32
  }
  func.func @transform_4(%arg0: i32) -> (i32, i32) {
    %c0_i32 = arith.constant 0 : i32
    %c0_i32_0 = arith.constant 0 : i32
    %c0_i32_1 = arith.constant 0 : i32
    return %c0_i32, %c0_i32_0 : i32, i32
  }
  func.func @transform_5(%arg0: i32) -> (i32, i32, i32) {
    %c0_i32 = arith.constant 0 : i32
    %c0_i32_0 = arith.constant 0 : i32
    %c0_i32_1 = arith.constant 0 : i32
    return %arg0, %c0_i32, %c0_i32_0 : i32, i32, i32
  }
}

</mosaic_0001>

<llo_original>
// kernel: tpu_custom_call.1
$region0: #{tpu_custom_call.1}
  #allocation0 [shape = 'u32[]', space=smem, size = 0x4, offset = 0x4, fixed_abs, tag = 'smem constant byte address 0x4 - core index']
  #allocation1 [shape = 'u32[144,128]{1,0:T(1,128)}', space=vmem, size = 0x12000, scoped, tag = 'internal scratch']
  #allocation2 [shape = 'f32[1,1]{1,0:T(1,128)S(6)}', space=smem, size = 0x200, scoped, tag = 'scoped memory for tpu_custom_call.1']
  %s0 = inlined_call_operand.vmem [shape: f32[8,32], index: 0, kind: input, shape index: {}]
  %s1 = inlined_call_operand.vmem [shape: f32[10,32], index: 1, kind: input, shape index: {}]
  %s2 = inlined_call_operand.vmem [shape: f32[10,1], index: 2, kind: input, shape index: {}]
  %s3 = inlined_call_operand.vmem [shape: f32[10,1], index: 3, kind: input, shape index: {}]
  %s4 = inlined_call_operand.<no memory space> [shape: f32[1,1], index: 4, kind: input, shape index: {}]
  %s5 = inlined_call_operand.hbm [shape: f32[1,1,8], index: 5, kind: output, shape index: {}]
  %s6 = sld [smem:[#allocation0]]
  $region30: #{tpu_custom_call.1} parent=0
    _
  %s8 = ssub.s32 1, %s6
  %s9 = scalar_select 0, %s8, %s6
  %10 = sst [smem:[#allocation2]] %s4
  $region1: #{tpu_custom_call.1} parent=0
    #allocation3 [shape = 'u8[512]{0}', space=vmem, size = 0x400, scoped, tag = 'output window, operand 0, single buffered']
    #allocation4 [shape = 's32[1]{0}', space=sflag, size = 0x4, scoped, tag = 'scoped memory for tpu_custom_call.1']
    %11 = vsyncpa [#allocation4], 0
    // Predicated region
    $region2: #{tpu_custom_call.1} parent=1 // pred_check
      _
    $region3: #{tpu_custom_call.1} parent=1 // pred_check_branch
      %13 = sbr.rel (0) target = $region5
    $region4: #{tpu_custom_call.1} parent=1 // pred_region
      _
    $region5: #{tpu_custom_call.1} parent=1 // pred_fallthru
      _
    // Predicated region
    $region6: #{tpu_custom_call.1} parent=1 // pred_check
      _
    $region7: #{tpu_custom_call.1} parent=1 // pred_check_branch
      %15 = sbr.rel (0) target = $region9
    $region8: #{tpu_custom_call.1} parent=1 // pred_region
      _
    $region9: #{tpu_custom_call.1} parent=1 // pred_fallthru
      _
    // Predicated region
    $region10: #{tpu_custom_call.1} parent=1 // pred_check
      _
    $region11: #{tpu_custom_call.1} parent=1 // pred_check_branch
      %17 = sbr.rel (0) target = $region13
    $region12: #{tpu_custom_call.1} parent=1 // pred_region
      _
    $region13: #{tpu_custom_call.1} parent=1 // pred_fallthru
      _
    // Predicated region
    $region14: #{tpu_custom_call.1} parent=1 // pred_check
      _
    $region15: #{tpu_custom_call.1} parent=1 // pred_check_branch
      %19 = sbr.rel (0) target = $region17
    $region16: #{tpu_custom_call.1} parent=1 // pred_region
      _
    $region17: #{tpu_custom_call.1} parent=1 // pred_fallthru
      _
    // Predicated region
    $region18: #{tpu_custom_call.1} parent=1 // pred_check
      _
    $region19: #{tpu_custom_call.1} parent=1 // pred_check_branch
      %21 = sbr.rel (0) target = $region21
    $region20: #{tpu_custom_call.1} parent=1 // pred_region
      _
    $region21: #{tpu_custom_call.1} parent=1 // pred_fallthru
      _
    %v22 = vld [vmem:[%s1] sm:$0xff]
    %v23 = vld [vmem:[%s1 + $0x8] sm:$0x3]
    %v24 = vld [vmem:[%s0] sm:$0xff]
    %v25 = vld [vmem:[%s2] sm:$0xff]
    %v26 = vld [vmem:[%s2 + $0x8] sm:$0x3]
    %28 = vset.pattern.permute.xlu0 0
    %29 = vperm.xlu0 %28, %v25
    %v30 = vpop.permute.xlu0 %29
    %33 = vset.pattern.permute.xlu0 0
    %34 = vperm.xlu0 %33, %v26
    %v35 = vpop.permute.xlu0 %34
    %vm37 = vcmask 261120
    %v39 = vsel %vm37, %v22, 0
    %v42 = vsel %vm37, %v23, 0
    %v45 = vsel %vm37, %v24, 0
    %47 = vmatprep.subr.mxu0 0.0
    %48 = vmatpush1.xpose.msra.mxu0 %v45
    %49 = vmatprep.subr.mxu0 0.0
    %50 = vmatpush1.xpose.msra.mxu0 0.0
    %51 = vmatprep.subr.mxu0 0.0
    %52 = vmatpush1.xpose.msra.mxu0 0.0
    %53 = vmatprep.subr.mxu0 0.0
    %54 = vmatpush1.xpose.msra.mxu0 0.0
    %55 = vmatprep.subr.mxu0 0.0
    %56 = vmatpush1.xpose.msra.mxu0 0.0
    %57 = vmatprep.subr.mxu0 0.0
    %58 = vmatpush1.xpose.msra.mxu0 0.0
    %59 = vmatprep.subr.mxu0 0.0
    %60 = vmatpush1.xpose.msra.mxu0 0.0
    %61 = vmatprep.subr.mxu0 0.0
    %62 = vmatpush1.xpose.msra.mxu0 0.0
    %63 = vmatprep.subr.mxu0 0.0
    %64 = vmatpush1.xpose.msra.mxu0 0.0
    %65 = vmatprep.subr.mxu0 0.0
    %66 = vmatpush1.xpose.msra.mxu0 0.0
    %67 = vmatprep.subr.mxu0 0.0
    %68 = vmatpush1.xpose.msra.mxu0 0.0
    %69 = vmatprep.subr.mxu0 0.0
    %70 = vmatpush1.xpose.msra.mxu0 0.0
    %71 = vmatprep.subr.mxu0 0.0
    %72 = vmatpush1.xpose.msra.mxu0 0.0
    %73 = vmatprep.subr.mxu0 0.0
    %74 = vmatpush1.xpose.msra.mxu0 0.0
    %75 = vmatprep.subr.mxu0 0.0
    %76 = vmatpush1.xpose.msra.mxu0 0.0
    %77 = vmatprep.subr.mxu0 0.0
    %78 = vmatpush1.xpose.msra.mxu0 0.0
    %79 = vmatprep.subr.mxu0 0.0
    %80 = vmatpush1.xpose.msra.mxu0 0.0
    %81 = vmatprep.subr.mxu0 0.0
    %82 = vmatpush1.xpose.msra.mxu0 0.0
    %83 = vmatprep.subr.mxu0 0.0
    %84 = vmatpush1.xpose.msra.mxu0 0.0
    %85 = vmatprep.subr.mxu0 0.0
    %86 = vmatpush1.xpose.msra.mxu0 0.0
    %87 = vmatprep.subr.mxu0 0.0
    %88 = vmatpush1.xpose.msra.mxu0 0.0
    %89 = vmatprep.subr.mxu0 0.0
    %90 = vmatpush1.xpose.msra.mxu0 0.0
    %91 = vmatprep.subr.mxu0 0.0
    %92 = vmatpush1.xpose.msra.mxu0 0.0
    %93 = vmatprep.subr.mxu0 0.0
    %94 = vmatpush1.xpose.msra.mxu0 0.0
    %95 = vmatprep.subr.mxu0 0.0
    %96 = vmatpush1.xpose.msra.mxu0 0.0
    %97 = vmatprep.subr.mxu0 0.0
    %98 = vmatpush1.xpose.msra.mxu0 0.0
    %99 = vmatprep.subr.mxu0 0.0
    %100 = vmatpush1.xpose.msra.mxu0 0.0
    %101 = vmatprep.subr.mxu0 0.0
    %102 = vmatpush1.xpose.msra.mxu0 0.0
    %103 = vmatprep.subr.mxu0 0.0
    %104 = vmatpush1.xpose.msra.mxu0 0.0
    %105 = vmatprep.subr.mxu0 0.0
    %106 = vmatpush1.xpose.msra.mxu0 0.0
    %107 = vmatprep.subr.mxu0 0.0
    %108 = vmatpush1.xpose.msra.mxu0 0.0
    %109 = vmatprep.subr.mxu0 0.0
    %110 = vmatpush1.xpose.msra.mxu0 0.0
    %111 = vmatprep.mubr.f32.mxu0 0.0
    %112 = vmatmul.mubr.f32.gmra.mrb[0].mxu0 %v39
    %v113 = vpop.f32.mrb[0].mxu0
    %v114 = vadd.f32 %v30, %v113
    %v115 = vpop.f32.mrb[0].mxu0
    %116 = vmatprep.mubr.f32.mxu0 0.0
    %117 = vmatmul.mubr.f32.gmra.mrb[0].mxu0 %v42
    %v118 = vpop.f32.mrb[0].mxu0
    %v119 = vadd.f32 %v35, %v118
    %v120 = vpop.f32.mrb[0].mxu0
    %121 = vdwg.mxu0
    %v122 = vmax.f32 %v114, 0.0
    %v123 = vmax.f32 %v119, 0.0
    %v124 = vld [vmem:[%s3] sm:$0xff]
    %v125 = vld [vmem:[%s3 + $0x8] sm:$0x3]
    %127 = vset.pattern.permute.xlu0 0
    %128 = vperm.xlu0 %127, %v124
    %v129 = vpop.permute.xlu0 %128
    %132 = vset.pattern.permute.xlu0 0
    %133 = vperm.xlu0 %132, %v125
    %v134 = vpop.permute.xlu0 %133
    %v136 = vmul.f32 %v122, %v129
    %v137 = vmul.f32 %v123, %v134
    %vm138 = vcmask 64512
    %v139 = vsel %vm138, %v136, 0.0
    %vm140 = vcmask 58368
    %v141 = vsel %vm140, %v137, 0.0
    %v142 = vadd.f32 %v139, %v141
    %v143 = vrot.slane %v142, 4
    %v144 = vadd.f32 %v142, %v143
    %v145 = vrot.slane %v144, 2
    %v146 = vadd.f32 %v144, %v145
    %v147 = vrot.slane %v146, 1
    %v148 = vadd.f32 %v146, %v147
    %s149 = sld [smem:[#allocation2]]
    %v150 = vstv %s149
    %v151 = vadd.f32 %v148, %v150
    %vm152 = vcmask 57344
    %153 = vst.msk [vmem:[#allocation3] sm:$0x1] %vm152, %v151
    // Predicated region
    $region22: #{tpu_custom_call.1} parent=1 // pred_check
      _
    $region23: #{tpu_custom_call.1} parent=1 // pred_check_branch
      %155 = sbr.rel (0) target = $region25
    $region24: #{tpu_custom_call.1} parent=1 // pred_region
      %s157 = ssub.s32 16, 16
      %158 = vsyncadd [#allocation4], %s157
      %s160 = sshll.u32 [#allocation3], 4
      %s161 = int_to_ptr.vmem [resolvable:$true] %s160
      %163 = dma.vmem_to_hbm [thread:$0]  %s161, 16, %s5, [#allocation4]
    $region25: #{tpu_custom_call.1} parent=1 // pred_fallthru
      _
    // Predicated region
    $region26: #{tpu_custom_call.1} parent=1 // pred_check
      _
    $region27: #{tpu_custom_call.1} parent=1 // pred_check_branch
      %165 = sbr.rel (0) target = $region29
    $region28: #{tpu_custom_call.1} parent=1 // pred_region
      %166 = dma.done [#allocation4], 16
    $region29: #{tpu_custom_call.1} parent=1 // pred_fallthru
      _
    %167 = vsyncpa [#allocation4], 1

</llo_original>
